<compile_context>
chip_gen: v7x
topology: tpu7x:2x2x1
jax: 0.10.0
libtpu: 0.0.40
codegen_flags: <defaults>
</compile_context>

<pallas_src>
import math

import numpy as np
import jax
import jax.numpy as jnp
from jax.experimental import pallas as pl
from jax.experimental.pallas import tpu as pltpu


# ----------------------------------------------------------------------------
# Kernel body: pure broadcast add  out[b, c] = x[b, c] + pe[0, c]
# ----------------------------------------------------------------------------
def _pe_add_kernel(x_ref, pe_ref, o_ref):
    o_ref[...] = x_ref[...] + pe_ref[...]


def make_sinusoidal_pe(seq_len, d_model, dtype=jnp.float32):
    """(1, seq_len, d_model) table identical to the PyTorch register_buffer."""
    position = jnp.arange(seq_len, dtype=jnp.float32)[:, None]            # (S, 1)
    div_term = jnp.exp(jnp.arange(0, d_model, 2, dtype=jnp.float32)
                       * (-math.log(10000.0) / d_model))                  # (D//2,)
    angles = position * div_term                                          # (S, D//2)
    # Interleave: pe[:, 0::2] = sin, pe[:, 1::2] = cos.
    pe = jnp.stack([jnp.sin(angles), jnp.cos(angles)], axis=-1)           # (S, D//2, 2)
    pe = pe.reshape(seq_len, d_model).astype(dtype)
    return pe[None]                                                       # (1, S, D)


def _vmem_budget():
    """(vmem_limit_bytes, per-step working-set budget) for the current chip."""
    try:
        phys = int(pltpu.get_tpu_info().vmem_capacity_bytes)
    except Exception:
        phys = 64 * 1024 * 1024            # conservative (v7x-sized) fallback
    phys = min(phys, 128 * 1024 * 1024)
    vmem_limit = (phys * 3) // 4           # leave compiler headroom
    budget = vmem_limit // 4               # pipelined working set per grid step
    return vmem_limit, budget


def _round_down(v, m):
    return (v // m) * m


def _pick_tiles(B, N, itemsize, budget):
    """VMEM-byte-aware (row, lane) tile sizes for a (B, N) broadcast add."""
    sub = max(8, 32 // itemsize)           # sublane packing: 8 f32, 16 bf16, 32 int8
    bt_min = B if B <= sub else sub

    def ws_bytes(bt, ct):
        # x + out blocks double-buffered, plus pe's (grid-invariant) double buffer.
        return (4 * bt + 2) * ct * itemsize

    # Lane tile: full (lane-dense) row if a minimal-height block fits the budget,
    # otherwise a multiple of 128 so stores stay unmasked and DMAs stay pipelinable.
    if N <= 128 or ws_bytes(bt_min, N) <= budget:
        ct = N
    else:
        ct = max(128, _round_down(budget // ((4 * bt_min + 2) * itemsize), 128))
        ct = min(ct, N)

    # Row tile: as many rows as fit the budget, rounded to the packing factor.
    bt_cap = max(1, (budget // (ct * itemsize) - 2) // 4)
    if bt_cap >= B:
        bt = B                              # full extent is always a legal block dim
    else:
        bt = max(bt_min, _round_down(bt_cap, sub))
    return bt, ct, sub


class SinusoidalPositionalEncoding:
    """Pallas-backed port of the PyTorch module (forward: x + pe[:, :L, :])."""

    _SMALL_BYTES = 256 * 1024              # below this, plain XLA add is faster

    def __init__(self, d_model, seq_len):
        self.d_model = d_model
        self.seq_len = seq_len
        self.pe = make_sinusoidal_pe(seq_len, d_model)   # (1, S, D) float32 buffer
        self._pe_flat_cache = {}                         # (L, dtype) -> (1, L*D)

    def _pe_flat(self, L, dtype):
        key = (L, np.dtype(dtype).name)
        if key not in self._pe_flat_cache:
            self._pe_flat_cache[key] = jnp.asarray(
                self.pe[:, :L, :].reshape(1, L * self.d_model), dtype=dtype)
        return self._pe_flat_cache[key]

    def __call__(self, x, *, force_pallas=False):
        B, L, D = x.shape
        assert D == self.d_model and L <= self.seq_len
        # Match torch/jax promotion (e.g. bf16 x + f32 pe -> f32 out).
        res_dtype = jnp.result_type(x.dtype, self.pe.dtype)
        itemsize = np.dtype(res_dtype).itemsize

        if B * L * D * itemsize < self._SMALL_BYTES and not force_pallas:
            return x + self.pe[:, :L, :]                 # tiny-problem fast path

        N = L * D
        x2 = x.reshape(B, N).astype(res_dtype)
        pe2 = self._pe_flat(L, res_dtype)

        vmem_limit, budget = _vmem_budget()
        bt, ct, sub = _pick_tiles(B, N, itemsize, budget)
        # Keep >=2 grid steps when the batch is big enough so both v7x
        # TensorCores get work under "parallel" megacore sharding.
        if bt >= B and B >= 2 * sub:
            bt = _round_down(B // 2, sub)

        grid = (pl.cdiv(B, bt), pl.cdiv(N, ct))
        out = pl.pallas_call(
            _pe_add_kernel,
            out_shape=jax.ShapeDtypeStruct((B, N), res_dtype),
            grid=grid,
            in_specs=[
                pl.BlockSpec((bt, ct), lambda i, j: (i, j)),   # x row/lane tile
                pl.BlockSpec((1, ct), lambda i, j: (0, j)),    # PE (batch-invariant)
            ],
            out_specs=pl.BlockSpec((bt, ct), lambda i, j: (i, j)),
            compiler_params=pltpu.CompilerParams(
                dimension_semantics=("parallel", "parallel"),
                vmem_limit_bytes=vmem_limit,
            ),
        )(x2, pe2)
        return out.reshape(B, L, D)


def reference_pe(x, pe):
    """Plain-JAX reference mirroring the PyTorch forward."""
    return x + pe[:, :x.shape[1], :]


if __name__ == "__main__":
    key = jax.random.PRNGKey(0)

    # --- primary test: module-sized small shapes, Pallas path forced ---------
    B, L, D = 2, 8, 32          # batch, seq fed to forward, d_model
    SEQ_LEN = 16                # module's registered max seq_len (>= L)
    x = jax.random.normal(key, (B, L, D), dtype=jnp.float32)
    module = SinusoidalPositionalEncoding(d_model=D, seq_len=SEQ_LEN)

    out = module(x, force_pallas=True)
    out = jax.block_until_ready(out)
    ref = reference_pe(x, module.pe)
    assert out.shape == ref.shape and out.dtype == ref.dtype
    assert jnp.allclose(out, ref, rtol=1e-6, atol=1e-6), "mismatch vs reference"

    # --- secondary test: multi-step grid / partial-tile path -----------------
    B2, L2, D2 = 16, 8, 128
    k2 = jax.random.PRNGKey(1)
    x2 = jax.random.normal(k2, (B2, L2, D2), dtype=jnp.float32)
    module2 = SinusoidalPositionalEncoding(d_model=D2, seq_len=L2)
    out2 = jax.block_until_ready(module2(x2, force_pallas=True))
    ref2 = reference_pe(x2, module2.pe)
    assert jnp.allclose(out2, ref2, rtol=1e-6, atol=1e-6), "mismatch (grid path)"

    print("KERNEL_OK")
</pallas_src>

<mosaic_0001>
module attributes {stable_mosaic.version = 11 : i64} {
  func.func @_pe_add_kernel(%arg0: i32, %arg1: i32, %arg2: memref<2x256xf32, #tpu.memory_space<vmem>>, %arg3: memref<1x256xf32, #tpu.memory_space<vmem>>, %arg4: memref<2x256xf32, #tpu.memory_space<vmem>>) attributes {dimension_semantics = [#tpu.dimension_semantics<parallel>, #tpu.dimension_semantics<parallel>], iteration_bounds = array<i64: 1, 1>, scalar_prefetch = 0 : i64, scratch_operands = 0 : i64, tpu.core_type = #tpu.core_type<tc>, window_params = [{transform_indices = @transform_0, window_bounds = array<i64: 2, 256>}, {transform_indices = @transform_1, window_bounds = array<i64: 1, 256>}, {transform_indices = @transform_2, window_bounds = array<i64: 2, 256>}]} {
    %c0 = arith.constant 0 : index
    %c0_0 = arith.constant 0 : index
    %0 = vector.load %arg2[%c0, %c0_0] : memref<2x256xf32, #tpu.memory_space<vmem>>, vector<2x256xf32>
    %c0_1 = arith.constant 0 : index
    %c0_2 = arith.constant 0 : index
    %1 = vector.load %arg3[%c0_1, %c0_2] : memref<1x256xf32, #tpu.memory_space<vmem>>, vector<1x256xf32>
    %2 = vector.broadcast %1 : vector<1x256xf32> to vector<2x256xf32>
    %3 = arith.addf %0, %2 : vector<2x256xf32>
    %c0_3 = arith.constant 0 : index
    %c0_4 = arith.constant 0 : index
    %4 = vector.load %arg4[%c0_3, %c0_4] : memref<2x256xf32, #tpu.memory_space<vmem>>, vector<2x256xf32>
    tpu.vector_store %arg4[%c0_3, %c0_4], %3 {strides = array<i32>} : memref<2x256xf32, #tpu.memory_space<vmem>>, vector<2x256xf32>,
    return
  }
  func.func @transform_0(%arg0: i32, %arg1: i32) -> (i32, i32) {
    %c0_i32 = arith.constant 0 : i32
    return %arg0, %arg1 : i32, i32
  }
  func.func @transform_1(%arg0: i32, %arg1: i32) -> (i32, i32) {
    %c0_i32 = arith.constant 0 : i32
    %c0_i32_0 = arith.constant 0 : i32
    return %c0_i32, %arg1 : i32, i32
  }
  func.func @transform_2(%arg0: i32, %arg1: i32) -> (i32, i32) {
    %c0_i32 = arith.constant 0 : i32
    return %arg0, %arg1 : i32, i32
  }
}

</mosaic_0001>

<llo_original>
// kernel: tpu_custom_call.1
$region0: #{tpu_custom_call.1}
  #allocation0 [shape = 'u32[]', space=smem, size = 0x4, offset = 0x4, fixed_abs, tag = 'smem constant byte address 0x4 - core index']
  #allocation1 [shape = 'u32[144,128]{1,0:T(1,128)}', space=vmem, size = 0x12000, scoped, tag = 'internal scratch']
  %s0 = inlined_call_operand.hbm [shape: f32[2,256], index: 0, kind: input, shape index: {}]
  %s1 = inlined_call_operand.vmem [shape: f32[1,256], index: 1, kind: input, shape index: {}]
  %s2 = inlined_call_operand.hbm [shape: f32[2,256], index: 2, kind: output, shape index: {}]
  %s3 = sld [smem:[#allocation0]]
  $region22: #{tpu_custom_call.1} parent=0
    _
  %s5 = ssub.s32 1, %s3
  %s6 = scalar_select 0, %s5, %s3
  $region1: #{tpu_custom_call.1} parent=0
    #allocation2 [shape = 'u8[2048]{0}', space=vmem, size = 0x800, scoped, tag = 'input window, operand 0, single buffered']
    #allocation3 [shape = 's32[1]{0}', space=sflag, size = 0x4, scoped, tag = 'scoped memory for tpu_custom_call.1']
    #allocation4 [shape = 's32[1]{0}', space=sflag, size = 0x4, scoped, tag = 'scoped memory for tpu_custom_call.1']
    #allocation5 [shape = 'u8[2048]{0}', space=vmem, size = 0x800, scoped, tag = 'output window, operand 0, single buffered']
    %7 = vsyncpa [#allocation3], 0
    %8 = vsyncpa [#allocation4], 0
    // Predicated region
    $region2: #{tpu_custom_call.1} parent=1 // pred_check
      _
    $region3: #{tpu_custom_call.1} parent=1 // pred_check_branch
      %10 = sbr.rel (0) target = $region5
    $region4: #{tpu_custom_call.1} parent=1 // pred_region
      %s12 = ssub.s32 64, 64
      %13 = vsyncadd [#allocation3], %s12
      %s15 = sshll.u32 [#allocation2], 4
      %s16 = int_to_ptr.vmem [resolvable:$true] %s15
      %18 = dma.hbm_to_vmem [thread:$0]  %s0, 64, %s16, [#allocation3]
    $region5: #{tpu_custom_call.1} parent=1 // pred_fallthru
      _
    // Predicated region
    $region6: #{tpu_custom_call.1} parent=1 // pred_check
      _
    $region7: #{tpu_custom_call.1} parent=1 // pred_check_branch
      %20 = sbr.rel (0) target = $region9
    $region8: #{tpu_custom_call.1} parent=1 // pred_region
      _
    $region9: #{tpu_custom_call.1} parent=1 // pred_fallthru
      _
    // Predicated region
    $region10: #{tpu_custom_call.1} parent=1 // pred_check
      _
    $region11: #{tpu_custom_call.1} parent=1 // pred_check_branch
      %22 = sbr.rel (0) target = $region13
    $region12: #{tpu_custom_call.1} parent=1 // pred_region
      %23 = dma.done [#allocation3], 64
    $region13: #{tpu_custom_call.1} parent=1 // pred_fallthru
      _
    %v24 = vld [vmem:[#allocation2] sm:$0xf]
    %v25 = vld [vmem:[%s1] sm:$0x3]
    %v27 = vlaneseq
    %v28 = vshrl.u32 %v27, 7
    %v29 = vsub.s32 0, %v28
    %v30 = vrot.slane %v25, %v29
    %v31 = vlaneseq
    %v32 = vshrl.u32 %v31, 7
    %v33 = vsub.s32 1, %v32
    %v34 = vrot.slane %v25, %v33
    %v35 = vcombine.low %v30, %v34
    %v37 = vunpack.c.l.s4 1983009808
    %v38 = vunpack.c.0.s8 %v37
    %v39 = vlaneseq
    %v40 = vshrl.u32 %v39, 7
    %v41 = vsub.s32 %v38, %v40
    %v42 = vrot.slane %v35, %v41
    %v44 = vadd.f32 %v24, %v42
    %45 = vst [vmem:[#allocation5] sm:$0xf] %v44
    // Predicated region
    $region14: #{tpu_custom_call.1} parent=1 // pred_check
      _
    $region15: #{tpu_custom_call.1} parent=1 // pred_check_branch
      %47 = sbr.rel (0) target = $region17
    $region16: #{tpu_custom_call.1} parent=1 // pred_region
      %s49 = ssub.s32 64, 64
      %50 = vsyncadd [#allocation4], %s49
      %s52 = sshll.u32 [#allocation5], 4
      %s53 = int_to_ptr.vmem [resolvable:$true] %s52
      %55 = dma.vmem_to_hbm [thread:$0]  %s53, 64, %s2, [#allocation4]
    $region17: #{tpu_custom_call.1} parent=1 // pred_fallthru
      _
    // Predicated region
    $region18: #{tpu_custom_call.1} parent=1 // pred_check
      _
    $region19: #{tpu_custom_call.1} parent=1 // pred_check_branch
      %57 = sbr.rel (0) target = $region21
    $region20: #{tpu_custom_call.1} parent=1 // pred_region
      %58 = dma.done [#allocation4], 64
    $region21: #{tpu_custom_call.1} parent=1 // pred_fallthru
      _
    %59 = vsyncpa [#allocation3], 1
    %60 = vsyncpa [#allocation4], 1

</llo_original>
